<compile_context>
chip_gen: v7x
topology: tpu7x:2x2x1
jax: 0.10.0
libtpu: 0.0.40
codegen_flags: <defaults>
</compile_context>

<pallas_src>
import jax
import jax.numpy as jnp
from jax.experimental import pallas as pl
from jax.experimental.pallas import tpu as pltpu


def reisz_kernel(x_ref, w_ref, b_ref, o_ref):
    # x_ref: (TM, D) tile of the (2*B, D) view of the input
    # w_ref: (1, D) row (f32 VPU path)  or  (D, 1) column (bf16 MXU path)
    # b_ref: (1,) bias scalar in SMEM
    # o_ref: (TM, 1) output tile
    b = b_ref[0]
    if x_ref.dtype == jnp.bfloat16:
        # v5e has no native bf16 VPU/EUP -> keep the MXU matvec for bf16.
        y = jnp.dot(x_ref[...], w_ref[...], preferred_element_type=jnp.float32)
    else:
        # f32: VPU multiply + cross-lane row reduce; avoids a 1-of-256-lane
        # MXU matmul that would run at ~0% utilization.
        y = jnp.sum(x_ref[...] * w_ref[...], axis=-1, keepdims=True)
    o_ref[...] = (y + b).astype(o_ref.dtype)


def _choose_tile_rows(rows, row_bytes):
    # Keep 2 (double-buffered) input tiles under ~8 MiB -> safe under the
    # default scoped-VMEM limit on all generations incl. v7x (64 MiB phys).
    budget_rows = max(8, (8 << 20) // (2 * row_bytes))
    tm = min(1024, budget_rows, rows)
    if tm < rows:
        tm = max(8, (tm // 8) * 8)  # sublane-aligned; partial last block is ok
    return tm


def reisz_head(x, w, b, model_out_dim, *, tile_rows=None):
    """x: (B, 2*model_out_dim); w: (1, model_out_dim) torch-style; b: (1,)."""
    B = x.shape[0]
    D = model_out_dim
    assert x.shape[1] == 2 * D
    rows = 2 * B

    # Row-major (B, 2*D) -> (2*B, D): a pure view (no copy). One GEMV total.
    x_rows = x.reshape(rows, D)

    if x.dtype == jnp.bfloat16:
        w_k = w.reshape(D, 1).astype(x.dtype)       # MXU column
    else:
        w_k = w.reshape(1, D).astype(jnp.float32)   # VPU broadcast row
    b_k = b.reshape(1).astype(jnp.float32)

    row_bytes = D * x.dtype.itemsize
    tm = tile_rows if tile_rows is not None else _choose_tile_rows(rows, row_bytes)
    grid = (pl.cdiv(rows, tm),)

    y = pl.pallas_call(
        reisz_kernel,
        out_shape=jax.ShapeDtypeStruct((rows, 1), x.dtype),
        grid=grid,
        in_specs=[
            pl.BlockSpec((tm, D), lambda i: (i, 0)),            # streamed batch tiles
            pl.BlockSpec(w_k.shape, lambda i: (0, 0)),          # resident weight
            pl.BlockSpec(memory_space=pltpu.MemorySpace.SMEM),  # scalar bias
        ],
        out_specs=pl.BlockSpec((tm, 1), lambda i: (i, 0)),
        compiler_params=pltpu.CompilerParams(
            dimension_semantics=("parallel",),  # megacore sharding on v7x
        ),
    )(x_rows, w_k, b_k)

    # (2*B, 1) -> (B, 2): free row-major reshape, matches torch.cat semantics.
    return y.reshape(B, 2)


# TODO(synk): the PyTorch module's linear.eval()/linear.train() toggling is a
# training-mode side effect with no effect on this bias-only Linear forward; omitted.


if __name__ == "__main__":
    key = jax.random.PRNGKey(0)
    B, D = 8, 32  # model_out_dim = 32 -> input features = 2*D = 64

    kx, kw, kb = jax.random.split(key, 3)
    x = jax.random.normal(kx, (B, 2 * D), dtype=jnp.float32)

    # Deterministic parameter init (mimics nn.Linear's uniform(-1/sqrt(D), 1/sqrt(D))).
    bound = 1.0 / (D ** 0.5)
    w = jax.random.uniform(kw, (1, D), minval=-bound, maxval=bound, dtype=jnp.float32)
    b = jax.random.uniform(kb, (1,), minval=-bound, maxval=bound, dtype=jnp.float32)

    out = reisz_head(x, w, b, D)
    out = jax.block_until_ready(out)

    ref = jnp.concatenate([x[:, :D] @ w.T + b, x[:, D:] @ w.T + b], axis=1)
    assert out.shape == (B, 2)
    assert jnp.allclose(out, ref, atol=1e-5, rtol=1e-5)

    # Second check exercising the multi-block grid + a partial tail tile
    # (rows = 2*B = 40, tile of 16 rows -> grid of 3 with a masked last block).
    B2 = 20
    x2 = jax.random.normal(jax.random.PRNGKey(1), (B2, 2 * D), dtype=jnp.float32)
    out2 = jax.block_until_ready(reisz_head(x2, w, b, D, tile_rows=16))
    ref2 = jnp.concatenate([x2[:, :D] @ w.T + b, x2[:, D:] @ w.T + b], axis=1)
    assert out2.shape == (B2, 2)
    assert jnp.allclose(out2, ref2, atol=1e-5, rtol=1e-5)

    print("KERNEL_OK")
</pallas_src>

<mosaic_0001>
module attributes {stable_mosaic.version = 11 : i64} {
  func.func @reisz_kernel(%arg0: i32, %arg1: memref<16x32xf32, #tpu.memory_space<vmem>>, %arg2: memref<1x32xf32, #tpu.memory_space<vmem>>, %arg3: memref<1xf32, #tpu.memory_space<smem>>, %arg4: memref<16x1xf32, #tpu.memory_space<vmem>>) attributes {dimension_semantics = [#tpu.dimension_semantics<parallel>], iteration_bounds = array<i64: 1>, scalar_prefetch = 0 : i64, scratch_operands = 0 : i64, tpu.core_type = #tpu.core_type<tc>, window_params = [{transform_indices = @transform_0, window_bounds = array<i64: 16, 32>}, {pipeline_mode = #tpu.pipeline_mode<synchronous>, transform_indices = @transform_1, window_bounds = array<i64: 1, 32>}, {transform_indices = @transform_2, window_bounds = array<i64: 1>}, {transform_indices = @transform_3, window_bounds = array<i64: 16, 1>}]} {
    %c0 = arith.constant 0 : index
    %0 = memref.load %arg3[%c0] : memref<1xf32, #tpu.memory_space<smem>>
    %c0_0 = arith.constant 0 : index
    %c0_1 = arith.constant 0 : index
    %1 = vector.load %arg1[%c0_0, %c0_1] : memref<16x32xf32, #tpu.memory_space<vmem>>, vector<16x32xf32>
    %c0_2 = arith.constant 0 : index
    %c0_3 = arith.constant 0 : index
    %2 = vector.load %arg2[%c0_2, %c0_3] : memref<1x32xf32, #tpu.memory_space<vmem>>, vector<1x32xf32>
    %3 = vector.broadcast %2 : vector<1x32xf32> to vector<16x32xf32>
    %4 = arith.mulf %1, %3 : vector<16x32xf32>
    %cst = arith.constant dense<0.000000e+00> : vector<16xf32>
    %5 = vector.multi_reduction <add>, %4, %cst [1] : vector<16x32xf32> to vector<16xf32>
    %6 = vector.shape_cast %5 : vector<16xf32> to vector<16x1xf32>
    %7 = vector.broadcast %0 : f32 to vector<16x1xf32>
    %8 = arith.addf %6, %7 : vector<16x1xf32>
    %c0_4 = arith.constant 0 : index
    %c0_5 = arith.constant 0 : index
    %9 = vector.load %arg4[%c0_4, %c0_5] : memref<16x1xf32, #tpu.memory_space<vmem>>, vector<16x1xf32>
    tpu.vector_store %arg4[%c0_4, %c0_5], %8 {strides = array<i32>} : memref<16x1xf32, #tpu.memory_space<vmem>>, vector<16x1xf32>,
    return
  }
  func.func @transform_0(%arg0: i32) -> (i32, i32) {
    %c0_i32 = arith.constant 0 : i32
    %c0_i32_0 = arith.constant 0 : i32
    return %arg0, %c0_i32 : i32, i32
  }
  func.func @transform_1(%arg0: i32) -> (i32, i32) {
    %c0_i32 = arith.constant 0 : i32
    %c0_i32_0 = arith.constant 0 : i32
    %c0_i32_1 = arith.constant 0 : i32
    return %c0_i32, %c0_i32_0 : i32, i32
  }
  func.func @transform_2(%arg0: i32) -> i32 {
    %c0_i32 = arith.constant 0 : i32
    %c0_i32_0 = arith.constant 0 : i32
    return %c0_i32 : i32
  }
  func.func @transform_3(%arg0: i32) -> (i32, i32) {
    %c0_i32 = arith.constant 0 : i32
    %c0_i32_0 = arith.constant 0 : i32
    return %arg0, %c0_i32 : i32, i32
  }
}

</mosaic_0001>

<llo_original>
// kernel: tpu_custom_call.1
$region0: #{tpu_custom_call.1}
  #allocation0 [shape = 'u32[]', space=smem, size = 0x4, offset = 0x4, fixed_abs, tag = 'smem constant byte address 0x4 - core index']
  #allocation1 [shape = 'u32[144,128]{1,0:T(1,128)}', space=vmem, size = 0x12000, scoped, tag = 'internal scratch']
  #allocation2 [shape = 'f32[1]{0:T(128)S(6)}', space=smem, size = 0x200, scoped, tag = 'scoped memory for tpu_custom_call.1']
  %s0 = inlined_call_operand.hbm [shape: f32[16,32], index: 0, kind: input, shape index: {}]
  %s1 = inlined_call_operand.vmem [shape: f32[1,32], index: 1, kind: input, shape index: {}]
  %s2 = inlined_call_operand.<no memory space> [shape: f32[1], index: 2, kind: input, shape index: {}]
  %s3 = inlined_call_operand.vmem [shape: f32[16,1], index: 3, kind: output, shape index: {}]
  %s4 = sld [smem:[#allocation0]]
  $region26: #{tpu_custom_call.1} parent=0
    _
  %s6 = ssub.s32 1, %s4
  %s7 = scalar_select 0, %s6, %s4
  %8 = sst [smem:[#allocation2]] %s2
  $region1: #{tpu_custom_call.1} parent=0
    #allocation3 [shape = 'u8[8192]{0}', space=vmem, size = 0x2000, scoped, tag = 'input window, operand 0, single buffered']
    #allocation4 [shape = 's32[1]{0}', space=sflag, size = 0x4, scoped, tag = 'scoped memory for tpu_custom_call.1']
    %9 = vsyncpa [#allocation4], 0
    // Predicated region
    $region2: #{tpu_custom_call.1} parent=1 // pred_check
      _
    $region3: #{tpu_custom_call.1} parent=1 // pred_check_branch
      %11 = sbr.rel (0) target = $region5
    $region4: #{tpu_custom_call.1} parent=1 // pred_region
      %s13 = ssub.s32 256, 256
      %14 = vsyncadd [#allocation4], %s13
      %s15 = sshll.u32 [#allocation3], 4
      %s16 = int_to_ptr.vmem [resolvable:$true] %s15
      %21 = dma.hbm_to_vmem [thread:$0]  %s0, 256, %s16, [#allocation4], 128, 128, 8
    $region5: #{tpu_custom_call.1} parent=1 // pred_fallthru
      _
    // Predicated region
    $region6: #{tpu_custom_call.1} parent=1 // pred_check
      _
    $region7: #{tpu_custom_call.1} parent=1 // pred_check_branch
      %23 = sbr.rel (0) target = $region9
    $region8: #{tpu_custom_call.1} parent=1 // pred_region
      _
    $region9: #{tpu_custom_call.1} parent=1 // pred_fallthru
      _
    // Predicated region
    $region10: #{tpu_custom_call.1} parent=1 // pred_check
      _
    $region11: #{tpu_custom_call.1} parent=1 // pred_check_branch
      %25 = sbr.rel (0) target = $region13
    $region12: #{tpu_custom_call.1} parent=1 // pred_region
      _
    $region13: #{tpu_custom_call.1} parent=1 // pred_fallthru
      _
    // Predicated region
    $region14: #{tpu_custom_call.1} parent=1 // pred_check
      _
    $region15: #{tpu_custom_call.1} parent=1 // pred_check_branch
      %27 = sbr.rel (0) target = $region17
    $region16: #{tpu_custom_call.1} parent=1 // pred_region
      %28 = dma.done [#allocation4], 256
    $region17: #{tpu_custom_call.1} parent=1 // pred_fallthru
      _
    %s29 = sld [smem:[#allocation2]]
    %v30 = vld [vmem:[#allocation3] sm:$0xff]
    %v31 = vld [vmem:[#allocation3 + $0x8] sm:$0xff]
    %v32 = vld [vmem:[%s1] sm:$0x1]
    %v34 = vlaneseq
    %v35 = vshrl.u32 %v34, 7
    %v36 = vsub.s32 0, %v35
    %v37 = vrot.slane %v32, %v36
    %v39 = vmul.f32 %v30, %v37
    %v40 = vmul.f32 %v31, %v37
    %vm41 = vcmask 261120
    %v42 = vsel %vm41, %v39, 0.0
    %43 = vadd.xlane.f32.xlu0 %v42
    %v44 = vpop.xlane.xlu0 %43
    %v45 = vsel %vm41, %v40, 0.0
    %46 = vadd.xlane.f32.xlu0 %v45
    %v47 = vpop.xlane.xlu0 %46
    %v48 = vstv %s29
    %v49 = vadd.f32 %v44, %v48
    %v50 = vadd.f32 %v47, %v48
    %vm51 = vcmask 7168
    %52 = vst.msk [vmem:[%s3] sm:$0xff] %vm51, %v49
    %53 = vst.msk [vmem:[%s3 + $0x8] sm:$0xff] %vm51, %v50
    // Predicated region
    $region18: #{tpu_custom_call.1} parent=1 // pred_check
      _
    $region19: #{tpu_custom_call.1} parent=1 // pred_check_branch
      %55 = sbr.rel (0) target = $region21
    $region20: #{tpu_custom_call.1} parent=1 // pred_region
      _
    $region21: #{tpu_custom_call.1} parent=1 // pred_fallthru
      _
    // Predicated region
    $region22: #{tpu_custom_call.1} parent=1 // pred_check
      _
    $region23: #{tpu_custom_call.1} parent=1 // pred_check_branch
      %57 = sbr.rel (0) target = $region25
    $region24: #{tpu_custom_call.1} parent=1 // pred_region
      _
    $region25: #{tpu_custom_call.1} parent=1 // pred_fallthru
      _
    %58 = vsyncpa [#allocation4], 1

</llo_original>
